<compile_context>
chip_gen: v7x
topology: tpu7x:2x2x1
jax: 0.10.0
libtpu: 0.0.40
codegen_flags: <defaults>
</compile_context>

<pallas_src>
import jax
import jax.numpy as jnp
from jax.experimental import pallas as pl
from jax.experimental.pallas import tpu as pltpu

NUM_CLASSES = 4   # leaf classes of the synthetic induced hierarchy (binary tree, depth 2)
CIN = 4           # input channels of the synthetic segmentation model (1x1 conv)
LANE = 128
N_DECISIONS = 3   # inner nodes of the depth-2 binary tree: root, left node, right node


def _segnbdt_kernel(dw_ref, db_ref, x_ref, o_ref):
    # dw_ref: SMEM (3, Cin)          decision-hyperplane weights (child1 - child0 per node)
    # db_ref: SMEM (3,)              decision-hyperplane biases
    # x_ref : VMEM (Cin, rows, 128)  channel-major, sublane+lane-dense pixel tile
    # o_ref : VMEM (C,   rows, 128)  one-hot logits, channel-major
    cin = x_ref.shape[0]
    xs = [x_ref[c] for c in range(cin)]          # dense (rows, 128) slabs

    def score(k):
        # VPU scalar-broadcast multiply-adds; scalars come straight from SMEM
        acc = xs[0] * dw_ref[k, 0]
        for c in range(1, cin):
            acc = acc + xs[c] * dw_ref[k, c]
        return acc + db_ref[k]

    # per-node argmax over 2 children; strict '>' => ties pick child 0 (like torch.max)
    r  = score(0) > 0.0      # root: go to right subtree ({2,3})
    a1 = score(1) > 0.0      # left node: pick class 1
    a2 = score(2) > 0.0      # right node: pick class 3
    nr = ~r

    # traverse_tree + predicted_to_logits fused: dense (rows, 128) one-hot stores
    o_ref[0] = (nr & ~a1).astype(jnp.float32)    # class 0
    o_ref[1] = (nr & a1).astype(jnp.float32)     # class 1
    o_ref[2] = (r & ~a2).astype(jnp.float32)     # class 2
    o_ref[3] = (r & a2).astype(jnp.float32)      # class 3


def build_node_matrix():
    """Averaging matrix for the fixed binary hierarchy over classes {0,1,2,3}.

    root : child0 = {0,1}, child1 = {2,3}
    left : child0 = {0},   child1 = {1}
    right: child0 = {2},   child1 = {3}
    """
    M = jnp.zeros((NUM_CLASSES, 2 * N_DECISIONS), dtype=jnp.float32)
    M = M.at[0, 0].set(0.5).at[1, 0].set(0.5)    # root / child 0
    M = M.at[2, 1].set(0.5).at[3, 1].set(0.5)    # root / child 1
    M = M.at[0, 2].set(1.0).at[1, 3].set(1.0)    # left node children
    M = M.at[2, 4].set(1.0).at[3, 5].set(1.0)    # right node children
    return M


def _choose_tiling(rows_total, n_batch, cap_rows=4096):
    """Return (tile_rows, rows_padded).

    tile_rows is a multiple of 8 (or the full extent); rows_padded is a multiple of
    tile_rows >= rows_total, so the grid never needs a full-extent VMEM-blowing tile.
    """
    cap = max(8, cap_rows)
    # v7x has 2 TensorCores: with batch == 1, cap the tile so the grid has >= 2
    # "parallel" steps (v5e/v6e are single-TC, so this is harmless there).
    if n_batch == 1 and rows_total >= 16:
        cap = min(cap, max(8, (rows_total // 2) // 8 * 8))
    if rows_total <= cap:
        return rows_total, rows_total            # full extent: always layout-legal
    t = (cap // 8) * 8
    # prefer an exact multiple-of-8 divisor (no padding needed)
    d = t
    while d >= 8:
        if rows_total % d == 0:
            return d, rows_total
        d -= 8
    # otherwise pad the pixel axis up to a multiple of the tile
    return t, ((rows_total + t - 1) // t) * t


def segnbdt_forward(x_nchw, conv_w_torch, conv_b, node_mat, *, cap_rows=4096):
    """x_nchw: (N, Cin, H, W) f32. conv_w_torch: (C, Cin) (1x1 conv weight, torch layout).
    conv_b: (C,). node_mat: (C, 2*N_DECISIONS) class->node averaging matrix."""
    N, Cin, H, W = x_nchw.shape
    C = node_mat.shape[0]
    assert C == NUM_CLASSES == 4, "kernel hard-codes the depth-2 binary hierarchy over 4 classes"
    HW = H * W

    # fold 1x1 conv + node-mean averaging + binary argmax into 3 decision hyperplanes
    cw = (node_mat.T @ conv_w_torch).astype(jnp.float32)               # (6, Cin)
    cb = (node_mat.T @ conv_b).astype(jnp.float32)                     # (6,)
    dw = jnp.stack([cw[1] - cw[0], cw[3] - cw[2], cw[5] - cw[4]])      # (3, Cin)
    db = jnp.stack([cb[1] - cb[0], cb[3] - cb[2], cb[5] - cb[4]])      # (3,)

    rows_total = pl.cdiv(HW, LANE)
    tile_rows, rows_padded = _choose_tiling(rows_total, N, cap_rows)
    pixels_padded = rows_padded * LANE

    # channel-major, sublane+lane-dense view: (N, Cin, rows, 128) -- free reshape
    x = x_nchw.reshape(N, Cin, HW)
    if pixels_padded != HW:
        x = jnp.pad(x, ((0, 0), (0, 0), (0, pixels_padded - HW)))
    x = x.reshape(N, Cin, rows_padded, LANE)

    grid = (N, rows_padded // tile_rows)

    out = pl.pallas_call(
        _segnbdt_kernel,
        out_shape=jax.ShapeDtypeStruct((N, C, rows_padded, LANE), jnp.float32),
        grid=grid,
        in_specs=[
            pl.BlockSpec(memory_space=pltpu.MemorySpace.SMEM),   # dw (3, Cin)
            pl.BlockSpec(memory_space=pltpu.MemorySpace.SMEM),   # db (3,)
            pl.BlockSpec((pl.Squeezed(), Cin, tile_rows, LANE), lambda n, i: (n, 0, i, 0)),
        ],
        out_specs=pl.BlockSpec((pl.Squeezed(), C, tile_rows, LANE), lambda n, i: (n, 0, i, 0)),
        compiler_params=pltpu.CompilerParams(
            dimension_semantics=("parallel", "parallel"),
            vmem_limit_bytes=48 << 20,
        ),
        cost_estimate=pl.CostEstimate(
            flops=2 * N * pixels_padded * Cin * N_DECISIONS,
            transcendentals=0,
            bytes_accessed=N * pixels_padded * (Cin + C) * 4,
        ),
    )(dw, db, x)

    # uncoerce_tensor: (N, C, rows*128) -> drop pixel padding -> (N, C, H, W)
    out = out.reshape(N, C, pixels_padded)
    if pixels_padded != HW:
        out = out[:, :, :HW]
    return out.reshape(N, C, H, W)


def segnbdt_reference(x_nchw, conv_w_torch, conv_b, node_mat):
    """Pure-JAX reference faithful to the PyTorch semantics (unfolded)."""
    N, Cin, H, W = x_nchw.shape
    C = node_mat.shape[0]
    xf = jnp.transpose(x_nchw, (0, 2, 3, 1)).reshape(-1, Cin)        # coerce_tensor
    logits = xf @ conv_w_torch.T + conv_b                            # model (1x1 conv)
    nl = logits @ node_mat                                           # per-node class means
    r = nl[:, 1] > nl[:, 0]
    a1 = (nl[:, 3] > nl[:, 2]).astype(jnp.int32)
    a2 = (nl[:, 5] > nl[:, 4]).astype(jnp.int32)
    pred = jnp.where(r, 2 + a2, a1)                                  # traverse_tree
    one_hot = jnp.eye(C, dtype=jnp.float32)[pred]                    # predicted_to_logits
    return jnp.transpose(one_hot.reshape(N, H, W, C), (0, 3, 1, 2))  # uncoerce_tensor


if __name__ == "__main__":
    # TODO(synk): pretrained checkpoint loading (load_state_dict_from_url) is replaced
    # by deterministic synthetic parameters; the Python-side `decisions` metadata list
    # from traverse_tree is not materialized (it does not affect the returned tensor).
    key = jax.random.PRNGKey(0)
    k_x, k_w, k_b = jax.random.split(key, 3)

    N, H, W = 2, 16, 16
    x = jax.random.normal(k_x, (N, CIN, H, W), dtype=jnp.float32)

    # synthetic segmentation model: 1x1 conv, torch weight layout (C, Cin)
    conv_w_torch = jax.random.normal(k_w, (NUM_CLASSES, CIN), dtype=jnp.float32) * 0.1
    conv_b = jax.random.normal(k_b, (NUM_CLASSES,), dtype=jnp.float32) * 0.1

    node_mat = build_node_matrix()

    out = segnbdt_forward(x, conv_w_torch, conv_b, node_mat)
    out = jax.block_until_ready(out)

    ref = segnbdt_reference(x, conv_w_torch, conv_b, node_mat)
    assert out.shape == (N, NUM_CLASSES, H, W)
    assert out.dtype == jnp.float32
    # each pixel is a one-hot vector over classes
    assert bool(jnp.all(jnp.sum(out, axis=1) == 1.0))
    # note: kernel uses folded decision hyperplanes; with random continuous inputs a
    # rounding-induced argmax flip vs. the unfolded reference is astronomically unlikely.
    assert bool(jnp.all(out == ref))

    print("KERNEL_OK")
</pallas_src>

<mosaic_0001>
module attributes {stable_mosaic.version = 11 : i64} {
  func.func @_segnbdt_kernel(%arg0: i32, %arg1: i32, %arg2: memref<3x4xf32, #tpu.memory_space<smem>>, %arg3: memref<3xf32, #tpu.memory_space<smem>>, %arg4: memref<1x4x2x128xf32, #tpu.memory_space<vmem>>, %arg5: memref<1x4x2x128xf32, #tpu.memory_space<vmem>>) attributes {dimension_semantics = [#tpu.dimension_semantics<parallel>, #tpu.dimension_semantics<parallel>], iteration_bounds = array<i64: 2, 1>, scalar_prefetch = 0 : i64, scratch_operands = 0 : i64, tpu.core_type = #tpu.core_type<tc>, window_params = [{transform_indices = @transform_0, window_bounds = array<i64: 3, 4>}, {transform_indices = @transform_1, window_bounds = array<i64: 3>}, {transform_indices = @transform_2, window_bounds = array<i64: 1, 4, 2, 128>}, {transform_indices = @transform_3, window_bounds = array<i64: 1, 4, 2, 128>}]} {
    %c0 = arith.constant 0 : index
    %c0_0 = arith.constant 0 : index
    %c0_1 = arith.constant 0 : index
    %c0_2 = arith.constant 0 : index
    %0 = vector.load %arg4[%c0, %c0_0, %c0_1, %c0_2] : memref<1x4x2x128xf32, #tpu.memory_space<vmem>>, vector<1x1x2x128xf32>
    %1 = vector.shape_cast %0 : vector<1x1x2x128xf32> to vector<2x128xf32>
    %c0_3 = arith.constant 0 : index
    %c1 = arith.constant 1 : index
    %c0_4 = arith.constant 0 : index
    %c0_5 = arith.constant 0 : index
    %2 = vector.load %arg4[%c0_3, %c1, %c0_4, %c0_5] : memref<1x4x2x128xf32, #tpu.memory_space<vmem>>, vector<1x1x2x128xf32>
    %3 = vector.shape_cast %2 : vector<1x1x2x128xf32> to vector<2x128xf32>
    %c0_6 = arith.constant 0 : index
    %c2 = arith.constant 2 : index
    %c0_7 = arith.constant 0 : index
    %c0_8 = arith.constant 0 : index
    %4 = vector.load %arg4[%c0_6, %c2, %c0_7, %c0_8] : memref<1x4x2x128xf32, #tpu.memory_space<vmem>>, vector<1x1x2x128xf32>
    %5 = vector.shape_cast %4 : vector<1x1x2x128xf32> to vector<2x128xf32>
    %c0_9 = arith.constant 0 : index
    %c3 = arith.constant 3 : index
    %c0_10 = arith.constant 0 : index
    %c0_11 = arith.constant 0 : index
    %6 = vector.load %arg4[%c0_9, %c3, %c0_10, %c0_11] : memref<1x4x2x128xf32, #tpu.memory_space<vmem>>, vector<1x1x2x128xf32>
    %7 = vector.shape_cast %6 : vector<1x1x2x128xf32> to vector<2x128xf32>
    %c0_12 = arith.constant 0 : index
    %c0_13 = arith.constant 0 : index
    %8 = memref.load %arg2[%c0_12, %c0_13] : memref<3x4xf32, #tpu.memory_space<smem>>
    %9 = vector.broadcast %8 : f32 to vector<2x128xf32>
    %10 = arith.mulf %1, %9 : vector<2x128xf32>
    %c0_14 = arith.constant 0 : index
    %c1_15 = arith.constant 1 : index
    %11 = memref.load %arg2[%c0_14, %c1_15] : memref<3x4xf32, #tpu.memory_space<smem>>
    %12 = vector.broadcast %11 : f32 to vector<2x128xf32>
    %13 = arith.mulf %3, %12 : vector<2x128xf32>
    %14 = arith.addf %10, %13 : vector<2x128xf32>
    %c0_16 = arith.constant 0 : index
    %c2_17 = arith.constant 2 : index
    %15 = memref.load %arg2[%c0_16, %c2_17] : memref<3x4xf32, #tpu.memory_space<smem>>
    %16 = vector.broadcast %15 : f32 to vector<2x128xf32>
    %17 = arith.mulf %5, %16 : vector<2x128xf32>
    %18 = arith.addf %14, %17 : vector<2x128xf32>
    %c0_18 = arith.constant 0 : index
    %c3_19 = arith.constant 3 : index
    %19 = memref.load %arg2[%c0_18, %c3_19] : memref<3x4xf32, #tpu.memory_space<smem>>
    %20 = vector.broadcast %19 : f32 to vector<2x128xf32>
    %21 = arith.mulf %7, %20 : vector<2x128xf32>
    %22 = arith.addf %18, %21 : vector<2x128xf32>
    %c0_20 = arith.constant 0 : index
    %23 = memref.load %arg3[%c0_20] : memref<3xf32, #tpu.memory_space<smem>>
    %24 = vector.broadcast %23 : f32 to vector<2x128xf32>
    %25 = arith.addf %22, %24 : vector<2x128xf32>
    %cst = arith.constant 0.000000e+00 : f32
    %26 = vector.broadcast %cst : f32 to vector<2x128xf32>
    %27 = arith.cmpf ogt, %25, %26 : vector<2x128xf32>
    %c1_21 = arith.constant 1 : index
    %c0_22 = arith.constant 0 : index
    %28 = memref.load %arg2[%c1_21, %c0_22] : memref<3x4xf32, #tpu.memory_space<smem>>
    %29 = vector.broadcast %28 : f32 to vector<2x128xf32>
    %30 = arith.mulf %1, %29 : vector<2x128xf32>
    %c1_23 = arith.constant 1 : index
    %c1_24 = arith.constant 1 : index
    %31 = memref.load %arg2[%c1_23, %c1_24] : memref<3x4xf32, #tpu.memory_space<smem>>
    %32 = vector.broadcast %31 : f32 to vector<2x128xf32>
    %33 = arith.mulf %3, %32 : vector<2x128xf32>
    %34 = arith.addf %30, %33 : vector<2x128xf32>
    %c1_25 = arith.constant 1 : index
    %c2_26 = arith.constant 2 : index
    %35 = memref.load %arg2[%c1_25, %c2_26] : memref<3x4xf32, #tpu.memory_space<smem>>
    %36 = vector.broadcast %35 : f32 to vector<2x128xf32>
    %37 = arith.mulf %5, %36 : vector<2x128xf32>
    %38 = arith.addf %34, %37 : vector<2x128xf32>
    %c1_27 = arith.constant 1 : index
    %c3_28 = arith.constant 3 : index
    %39 = memref.load %arg2[%c1_27, %c3_28] : memref<3x4xf32, #tpu.memory_space<smem>>
    %40 = vector.broadcast %39 : f32 to vector<2x128xf32>
    %41 = arith.mulf %7, %40 : vector<2x128xf32>
    %42 = arith.addf %38, %41 : vector<2x128xf32>
    %c1_29 = arith.constant 1 : index
    %43 = memref.load %arg3[%c1_29] : memref<3xf32, #tpu.memory_space<smem>>
    %44 = vector.broadcast %43 : f32 to vector<2x128xf32>
    %45 = arith.addf %42, %44 : vector<2x128xf32>
    %cst_30 = arith.constant 0.000000e+00 : f32
    %46 = vector.broadcast %cst_30 : f32 to vector<2x128xf32>
    %47 = arith.cmpf ogt, %45, %46 : vector<2x128xf32>
    %c2_31 = arith.constant 2 : index
    %c0_32 = arith.constant 0 : index
    %48 = memref.load %arg2[%c2_31, %c0_32] : memref<3x4xf32, #tpu.memory_space<smem>>
    %49 = vector.broadcast %48 : f32 to vector<2x128xf32>
    %50 = arith.mulf %1, %49 : vector<2x128xf32>
    %c2_33 = arith.constant 2 : index
    %c1_34 = arith.constant 1 : index
    %51 = memref.load %arg2[%c2_33, %c1_34] : memref<3x4xf32, #tpu.memory_space<smem>>
    %52 = vector.broadcast %51 : f32 to vector<2x128xf32>
    %53 = arith.mulf %3, %52 : vector<2x128xf32>
    %54 = arith.addf %50, %53 : vector<2x128xf32>
    %c2_35 = arith.constant 2 : index
    %c2_36 = arith.constant 2 : index
    %55 = memref.load %arg2[%c2_35, %c2_36] : memref<3x4xf32, #tpu.memory_space<smem>>
    %56 = vector.broadcast %55 : f32 to vector<2x128xf32>
    %57 = arith.mulf %5, %56 : vector<2x128xf32>
    %58 = arith.addf %54, %57 : vector<2x128xf32>
    %c2_37 = arith.constant 2 : index
    %c3_38 = arith.constant 3 : index
    %59 = memref.load %arg2[%c2_37, %c3_38] : memref<3x4xf32, #tpu.memory_space<smem>>
    %60 = vector.broadcast %59 : f32 to vector<2x128xf32>
    %61 = arith.mulf %7, %60 : vector<2x128xf32>
    %62 = arith.addf %58, %61 : vector<2x128xf32>
    %c2_39 = arith.constant 2 : index
    %63 = memref.load %arg3[%c2_39] : memref<3xf32, #tpu.memory_space<smem>>
    %64 = vector.broadcast %63 : f32 to vector<2x128xf32>
    %65 = arith.addf %62, %64 : vector<2x128xf32>
    %cst_40 = arith.constant 0.000000e+00 : f32
    %66 = vector.broadcast %cst_40 : f32 to vector<2x128xf32>
    %67 = arith.cmpf ogt, %65, %66 : vector<2x128xf32>
    %cst_41 = arith.constant dense<true> : vector<2x128xi1>
    %68 = arith.xori %27, %cst_41 : vector<2x128xi1>
    %cst_42 = arith.constant dense<true> : vector<2x128xi1>
    %69 = arith.xori %47, %cst_42 : vector<2x128xi1>
    %70 = arith.andi %68, %69 : vector<2x128xi1>
    %71 = arith.extui %70 : vector<2x128xi1> to vector<2x128xi32>
    %72 = arith.sitofp %71 : vector<2x128xi32> to vector<2x128xf32>
    %c0_43 = arith.constant 0 : index
    %c0_44 = arith.constant 0 : index
    %c0_45 = arith.constant 0 : index
    %c0_46 = arith.constant 0 : index
    %73 = vector.load %arg5[%c0_43, %c0_44, %c0_45, %c0_46] : memref<1x4x2x128xf32, #tpu.memory_space<vmem>>, vector<1x1x2x128xf32>
    %74 = vector.shape_cast %73 : vector<1x1x2x128xf32> to vector<2x128xf32>
    %75 = vector.shape_cast %72 : vector<2x128xf32> to vector<1x1x2x128xf32>
    tpu.vector_store %arg5[%c0_43, %c0_44, %c0_45, %c0_46], %75 {strides = array<i32>} : memref<1x4x2x128xf32, #tpu.memory_space<vmem>>, vector<1x1x2x128xf32>,
    %76 = arith.andi %68, %47 : vector<2x128xi1>
    %77 = arith.extui %76 : vector<2x128xi1> to vector<2x128xi32>
    %78 = arith.sitofp %77 : vector<2x128xi32> to vector<2x128xf32>
    %c0_47 = arith.constant 0 : index
    %c1_48 = arith.constant 1 : index
    %c0_49 = arith.constant 0 : index
    %c0_50 = arith.constant 0 : index
    %79 = vector.load %arg5[%c0_47, %c1_48, %c0_49, %c0_50] : memref<1x4x2x128xf32, #tpu.memory_space<vmem>>, vector<1x1x2x128xf32>
    %80 = vector.shape_cast %79 : vector<1x1x2x128xf32> to vector<2x128xf32>
    %81 = vector.shape_cast %78 : vector<2x128xf32> to vector<1x1x2x128xf32>
    tpu.vector_store %arg5[%c0_47, %c1_48, %c0_49, %c0_50], %81 {strides = array<i32>} : memref<1x4x2x128xf32, #tpu.memory_space<vmem>>, vector<1x1x2x128xf32>,
    %cst_51 = arith.constant dense<true> : vector<2x128xi1>
    %82 = arith.xori %67, %cst_51 : vector<2x128xi1>
    %83 = arith.andi %27, %82 : vector<2x128xi1>
    %84 = arith.extui %83 : vector<2x128xi1> to vector<2x128xi32>
    %85 = arith.sitofp %84 : vector<2x128xi32> to vector<2x128xf32>
    %c0_52 = arith.constant 0 : index
    %c2_53 = arith.constant 2 : index
    %c0_54 = arith.constant 0 : index
    %c0_55 = arith.constant 0 : index
    %86 = vector.load %arg5[%c0_52, %c2_53, %c0_54, %c0_55] : memref<1x4x2x128xf32, #tpu.memory_space<vmem>>, vector<1x1x2x128xf32>
    %87 = vector.shape_cast %86 : vector<1x1x2x128xf32> to vector<2x128xf32>
    %88 = vector.shape_cast %85 : vector<2x128xf32> to vector<1x1x2x128xf32>
    tpu.vector_store %arg5[%c0_52, %c2_53, %c0_54, %c0_55], %88 {strides = array<i32>} : memref<1x4x2x128xf32, #tpu.memory_space<vmem>>, vector<1x1x2x128xf32>,
    %89 = arith.andi %27, %67 : vector<2x128xi1>
    %90 = arith.extui %89 : vector<2x128xi1> to vector<2x128xi32>
    %91 = arith.sitofp %90 : vector<2x128xi32> to vector<2x128xf32>
    %c0_56 = arith.constant 0 : index
    %c3_57 = arith.constant 3 : index
    %c0_58 = arith.constant 0 : index
    %c0_59 = arith.constant 0 : index
    %92 = vector.load %arg5[%c0_56, %c3_57, %c0_58, %c0_59] : memref<1x4x2x128xf32, #tpu.memory_space<vmem>>, vector<1x1x2x128xf32>
    %93 = vector.shape_cast %92 : vector<1x1x2x128xf32> to vector<2x128xf32>
    %94 = vector.shape_cast %91 : vector<2x128xf32> to vector<1x1x2x128xf32>
    tpu.vector_store %arg5[%c0_56, %c3_57, %c0_58, %c0_59], %94 {strides = array<i32>} : memref<1x4x2x128xf32, #tpu.memory_space<vmem>>, vector<1x1x2x128xf32>,
    return
  }
  func.func @transform_0(%arg0: i32, %arg1: i32) -> (i32, i32) {
    %c0_i32 = arith.constant 0 : i32
    %c0_i32_0 = arith.constant 0 : i32
    %c0_i32_1 = arith.constant 0 : i32
    return %c0_i32, %c0_i32_0 : i32, i32
  }
  func.func @transform_1(%arg0: i32, %arg1: i32) -> i32 {
    %c0_i32 = arith.constant 0 : i32
    %c0_i32_0 = arith.constant 0 : i32
    return %c0_i32 : i32
  }
  func.func @transform_2(%arg0: i32, %arg1: i32) -> (i32, i32, i32, i32) {
    %c0_i32 = arith.constant 0 : i32
    %c0_i32_0 = arith.constant 0 : i32
    %c0_i32_1 = arith.constant 0 : i32
    return %arg0, %c0_i32, %arg1, %c0_i32_0 : i32, i32, i32, i32
  }
  func.func @transform_3(%arg0: i32, %arg1: i32) -> (i32, i32, i32, i32) {
    %c0_i32 = arith.constant 0 : i32
    %c0_i32_0 = arith.constant 0 : i32
    %c0_i32_1 = arith.constant 0 : i32
    return %arg0, %c0_i32, %arg1, %c0_i32_0 : i32, i32, i32, i32
  }
}

</mosaic_0001>

<llo_original>
// kernel: tpu_custom_call.1
$region0: #{tpu_custom_call.1}
  #allocation0 [shape = 'u32[]', space=smem, size = 0x4, offset = 0x4, fixed_abs, tag = 'smem constant byte address 0x4 - core index']
  #allocation1 [shape = 'u32[144,128]{1,0:T(1,128)}', space=vmem, size = 0x12000, scoped, tag = 'internal scratch']
  %s0 = inlined_call_operand.hbm [shape: f32[3,4], index: 0, kind: input, shape index: {}]
  %s1 = inlined_call_operand.vmem [shape: f32[3], index: 1, kind: input, shape index: {}]
  %s2 = inlined_call_operand.hbm [shape: f32[2,4,2,128], index: 2, kind: input, shape index: {}]
  %s3 = inlined_call_operand.hbm [shape: f32[2,4,2,128], index: 3, kind: output, shape index: {}]
  %s4 = sld [smem:[#allocation0]]
  $region57: #{tpu_custom_call.1} parent=0
    _
  %s6 = ssub.s32 1, %s4
  %s7 = scalar_select 0, %s6, %s4
  $region1: #{tpu_custom_call.1} parent=0
    #allocation2 [shape = 'u8[2048]{0}', space=smem, size = 0x800, scoped, tag = 'input window, operand 0, single buffered']
    #allocation3 [shape = 's32[2]{0}', space=sflag, size = 0x8, scoped, tag = 'scoped memory for tpu_custom_call.1']
    #allocation4 [shape = 's32[2]{0}', space=sflag, size = 0x8, scoped, tag = 'scoped memory for tpu_custom_call.1']
    #allocation5 [shape = 's32[2]{0}', space=sflag, size = 0x8, scoped, tag = 'scoped memory for tpu_custom_call.1']
    #allocation6 [shape = 's32[2]{0}', space=sflag, size = 0x8, scoped, tag = 'scoped memory for tpu_custom_call.1']
    #allocation7 [shape = 'u8[512]{0}', space=smem, size = 0x200, scoped, tag = 'input window, operand 1, single buffered']
    #allocation8 [shape = 'u8[8192]{0}', space=vmem, size = 0x2000, scoped, tag = 'input window, operand 2']
    #allocation9 [shape = 'u8[8192]{0}', space=vmem, size = 0x2000, scoped, tag = 'output window, operand 0']
    %8 = vsyncpa [#allocation5], 0
    %9 = vsyncpa [#allocation6], 0
    %10 = vsyncpa [#allocation3], 0
    %s11 = scalar_lea.sflag [#allocation3], 1
    %12 = vsyncpa %s11, 0
    %13 = vsyncpa [#allocation4], 0
    %s14 = scalar_lea.sflag [#allocation4], 1
    %15 = vsyncpa %s14, 0
    loop: start=0, step=1, limit=4
    $region2: #{tpu_custom_call.1} parent=1 // loop_pre_header
      _
    $region3: #{tpu_custom_call.1} parent=1 // loop_header
      %s17 = sphi 0, %s21
      %p18 = scmp.ge.s32.totalorder %s17, 4
      %s24 = sphi 0, %s36
      %s25 = sphi 0, %s32
      %s26 = sphi 0, %s24
      %s27 = sphi 0, %s25
      %s28 = sphi 0, %s26
      %s29 = sphi 0, %s27
      %s37 = sphi 0, %s37
      %s39 = sphi 0, %s37
      %s40 = sphi 0, %s39
      %s54 = sphi 0, %s40
      %s58 = sphi 0, %s58
      %s60 = sphi 0, %s58
      %s61 = sphi 0, %s60
      %s75 = sphi 0, %s61
      %s83 = sphi 0, %s85
      %s86 = sphi 0, %s83
      %s87 = sphi 0, %s86
      %s103 = sphi 0, %s87
      %s111 = sphi 0, %s113
      %s114 = sphi 0, %s111
      %s115 = sphi 0, %s114
      %s131 = sphi 0, %s115
    $region4: #{tpu_custom_call.1} parent=1 // loop_header_branch
      %20 = sbr.rel (%p18) target = $region8
    $region5: #{tpu_custom_call.1} parent=1 // loop_body
      %s22 = ssub.s32 %s17, 1
      %s23 = ssub.s32 %s17, 2
      %s30 = sadd.s32 1, %s25
      %p31 = scmp.ge.s32.totalorder %s30, 1
      %s32 = scalar_select %p31, 0, %s30
      %s33 = sadd.s32 1, %s24
      %s34 = scalar_select %p31, %s33, %s24
      %p35 = scmp.ge.s32.totalorder %s34, 2
      %s36 = scalar_select %p35, 0, %s34
      %s38 = sadd.s32 %s37, 1
      %p41 = scmp.eq.s32.totalorder %s17, 1
      %p42 = scmp.ne.s32.totalorder %s37, %s39
      %p43 = scmp.eq.s32.totalorder %s17, 0
      %p44 = por %p42, %p43
      %p45 = scmp.ne.s32.totalorder %s37, %s39
      %p46 = scmp.eq.s32.totalorder %s22, 1
      %p47 = por %p45, %p46
      %p48 = scmp.ne.s32.totalorder %s39, %s40
      %p49 = scmp.eq.s32.totalorder %s22, 0
      %p50 = por %p48, %p49
      %p51 = scmp.ne.s32.totalorder %s39, %s40
      %p52 = scmp.eq.s32.totalorder %s23, 1
      %p53 = por %p51, %p52
      %p55 = scmp.ne.s32.totalorder %s40, %s54
      %p56 = scmp.eq.s32.totalorder %s23, 0
      %p57 = por %p55, %p56
      %s59 = sadd.s32 %s58, 1
      %p62 = scmp.eq.s32.totalorder %s17, 1
      %p63 = scmp.ne.s32.totalorder %s58, %s60
      %p64 = scmp.eq.s32.totalorder %s17, 0
      %p65 = por %p63, %p64
      %p66 = scmp.ne.s32.totalorder %s58, %s60
      %p67 = scmp.eq.s32.totalorder %s22, 1
      %p68 = por %p66, %p67
      %p69 = scmp.ne.s32.totalorder %s60, %s61
      %p70 = scmp.eq.s32.totalorder %s22, 0
      %p71 = por %p69, %p70
      %p72 = scmp.ne.s32.totalorder %s60, %s61
      %p73 = scmp.eq.s32.totalorder %s23, 1
      %p74 = por %p72, %p73
      %p76 = scmp.ne.s32.totalorder %s61, %s75
      %p77 = scmp.eq.s32.totalorder %s23, 0
      %p78 = por %p76, %p77
      %s79 = ssub.s32 %s24, %s36
      %s80 = ssub.s32 %s25, %s32
      %s81 = sor.u32 %s79, %s80
      %p82 = scmp.eq.s32.totalorder %s81, 0
      %s84 = sadd.s32 %s83, 1
      %s85 = scalar_select %p82, %s83, %s84
      %p88 = pneg %p82
      %p89 = scmp.eq.s32.totalorder %s17, 1
      %p90 = por %p88, %p89
      %p91 = scmp.ne.s32.totalorder %s83, %s86
      %p92 = scmp.eq.s32.totalorder %s17, 0
      %p93 = por %p91, %p92
      %p94 = scmp.ne.s32.totalorder %s83, %s86
      %p95 = scmp.eq.s32.totalorder %s22, 1
      %p96 = por %p94, %p95
      %p97 = scmp.ne.s32.totalorder %s86, %s87
      %p98 = scmp.eq.s32.totalorder %s22, 0
      %p99 = por %p97, %p98
      %p100 = scmp.ne.s32.totalorder %s86, %s87
      %p101 = scmp.eq.s32.totalorder %s23, 1
      %p102 = por %p100, %p101
      %p104 = scmp.ne.s32.totalorder %s87, %s103
      %p105 = scmp.eq.s32.totalorder %s23, 0
      %p106 = por %p104, %p105
      %s107 = ssub.s32 %s24, %s36
      %s108 = ssub.s32 %s25, %s32
      %s109 = sor.u32 %s107, %s108
      %p110 = scmp.eq.s32.totalorder %s109, 0
      %s112 = sadd.s32 %s111, 1
      %s113 = scalar_select %p110, %s111, %s112
      %p116 = pneg %p110
      %p117 = scmp.eq.s32.totalorder %s17, 1
      %p118 = por %p116, %p117
      %p119 = scmp.ne.s32.totalorder %s111, %s114
      %p120 = scmp.eq.s32.totalorder %s17, 0
      %p121 = por %p119, %p120
      %p122 = scmp.ne.s32.totalorder %s111, %s114
      %p123 = scmp.eq.s32.totalorder %s22, 1
      %p124 = por %p122, %p123
      %p125 = scmp.ne.s32.totalorder %s114, %s115
      %p126 = scmp.eq.s32.totalorder %s22, 0
      %p127 = por %p125, %p126
      %p128 = scmp.ne.s32.totalorder %s114, %s115
      %p129 = scmp.eq.s32.totalorder %s23, 1
      %p130 = por %p128, %p129
      %p132 = scmp.ne.s32.totalorder %s115, %s131
      %p133 = scmp.eq.s32.totalorder %s23, 0
      %p134 = por %p132, %p133
      %p135 = scmp.le.s32.totalorder 1, %s17
      %p136 = scmp.lt.s32.totalorder %s17, 3
      %p137 = pnand %p135, %p136
      %p138 = pneg %p137
      // Predicated region
      $region9: #{tpu_custom_call.1} parent=5 // pred_check
        _
      $region10: #{tpu_custom_call.1} parent=5 // pred_check_branch
        %140 = sbr.rel (%p137) target = $region12
      $region11: #{tpu_custom_call.1} parent=5 // pred_region
        %s141 = ssub.s32 %s17, 1
        // Predicated region
        $region13: #{tpu_custom_call.1} parent=11 // pred_check
          %p142 = pneg %p50
        $region14: #{tpu_custom_call.1} parent=11 // pred_check_branch
          %144 = sbr.rel (%p142) target = $region16
        $region15: #{tpu_custom_call.1} parent=11 // pred_region
          %s146 = ssub.s32 64, 64
          %147 = vsyncadd [#allocation5], %s146
          %150 = dma.hbm_to_smem %s0, 64, [#allocation2], [#allocation5]
        $region16: #{tpu_custom_call.1} parent=11 // pred_fallthru
          _
        // Predicated region
        $region17: #{tpu_custom_call.1} parent=11 // pred_check
          %p151 = pneg %p71
        $region18: #{tpu_custom_call.1} parent=11 // pred_check_branch
          %153 = sbr.rel (%p151) target = $region20
        $region19: #{tpu_custom_call.1} parent=11 // pred_region
          %s155 = ssub.s32 16, 16
          %156 = vsyncadd [#allocation6], %s155
          %s158 = sshll.u32 %s1, 4
          %s159 = int_to_ptr.vmem [resolvable:$true] %s158
          %161 = dma.vmem_to_smem %s159, 16, [#allocation7], [#allocation6]
        $region20: #{tpu_custom_call.1} parent=11 // pred_fallthru
          _
      $region12: #{tpu_custom_call.1} parent=5 // pred_fallthru
        _
      %p162 = scmp.lt.s32.totalorder %s17, 2
      // Predicated region
      $region21: #{tpu_custom_call.1} parent=5 // pred_check
        %p163 = pneg %p162
      $region22: #{tpu_custom_call.1} parent=5 // pred_check_branch
        %165 = sbr.rel (%p163) target = $region24
      $region23: #{tpu_custom_call.1} parent=5 // pred_region
        // Predicated region
        $region25: #{tpu_custom_call.1} parent=23 // pred_check
          %p166 = pneg %p93
        $region26: #{tpu_custom_call.1} parent=23 // pred_check_branch
          %168 = sbr.rel (%p166) target = $region28
        $region27: #{tpu_custom_call.1} parent=23 // pred_region
          %s169 = sand.u32 %s83, 1
          %s170 = scalar_lea.sflag [#allocation3], %s169
          %s171 = sand.u32 %s83, 1
          %s172 = smul.addr %s171, 8
          %s173 = scalar_lea.vmem [#allocation8], %s172
          %s175 = ssub.s32 128, 128
          %176 = vsyncadd %s170, %s175
          %s177 = smul.addr %s24, 4
          %s178 = sadd.s32 %s25, %s177
          %s179 = smul.addr %s178, 32
          %s180 = scalar_lea.hbm %s2, %s179
          %s181 = sshll.u32 %s173, 4
          %s182 = int_to_ptr.vmem [resolvable:$true] %s181
          %187 = dma.hbm_to_vmem [thread:$0]  %s180, 128, %s182, %s170, 32, 32, 2
        $region28: #{tpu_custom_call.1} parent=23 // pred_fallthru
          _
      $region24: #{tpu_custom_call.1} parent=5 // pred_fallthru
        _
      %p188 = scmp.le.s32.totalorder 1, %s17
      %p189 = scmp.lt.s32.totalorder %s17, 3
      %p190 = pnand %p188, %p189
      %p191 = pneg %p190
      // Predicated region
      $region29: #{tpu_custom_call.1} parent=5 // pred_check
        _
      $region30: #{tpu_custom_call.1} parent=5 // pred_check_branch
        %193 = sbr.rel (%p190) target = $region32
      $region31: #{tpu_custom_call.1} parent=5 // pred_region
        %s194 = ssub.s32 %s17, 1
        // Predicated region
        $region33: #{tpu_custom_call.1} parent=31 // pred_check
          %p195 = pneg %p50
        $region34: #{tpu_custom_call.1} parent=31 // pred_check_branch
          %197 = sbr.rel (%p195) target = $region36
        $region35: #{tpu_custom_call.1} parent=31 // pred_region
          %198 = dma.done [#allocation5], 64
        $region36: #{tpu_custom_call.1} parent=31 // pred_fallthru
          _
        // Predicated region
        $region37: #{tpu_custom_call.1} parent=31 // pred_check
          %p199 = pneg %p71
        $region38: #{tpu_custom_call.1} parent=31 // pred_check_branch
          %201 = sbr.rel (%p199) target = $region40
        $region39: #{tpu_custom_call.1} parent=31 // pred_region
          %202 = dma.done [#allocation6], 16
        $region40: #{tpu_custom_call.1} parent=31 // pred_fallthru
          _
        %s203 = sand.u32 %s86, 1
        %s204 = scalar_lea.sflag [#allocation3], %s203
        %s205 = sand.u32 %s86, 1
        %s206 = smul.addr %s205, 8
        %s207 = scalar_lea.vmem [#allocation8], %s206
        // Predicated region
        $region41: #{tpu_custom_call.1} parent=31 // pred_check
          %p208 = pneg %p99
        $region42: #{tpu_custom_call.1} parent=31 // pred_check_branch
          %210 = sbr.rel (%p208) target = $region44
        $region43: #{tpu_custom_call.1} parent=31 // pred_region
          %211 = dma.done %s204, 128
        $region44: #{tpu_custom_call.1} parent=31 // pred_fallthru
          _
        %212 = sfence
        %p213 = pneg %p50
        %p214 = pneg %p47
        %p215 = pneg %p71
        %p216 = pneg %p68
        %s217 = sand.u32 %s86, 1
        %s218 = scalar_lea.sflag [#allocation3], %s217
        %s219 = sand.u32 %s86, 1
        %s220 = smul.addr %s219, 8
        %s221 = scalar_lea.vmem [#allocation8], %s220
        %p222 = pneg %p99
        %p223 = pneg %p96
        %p224 = pneg %p127
        %p225 = pneg %p124
        %s226 = sand.u32 %s114, 1
        %s227 = scalar_lea.sflag [#allocation4], %s226
        %s228 = sand.u32 %s114, 1
        %s229 = smul.addr %s228, 8
        %s230 = scalar_lea.vmem [#allocation9], %s229
        %v231 = vld [vmem:[%s207] sm:$0x3]
        %s232 = scalar_lea.vmem %s207, 2 [#allocation8]
        %v233 = vld [vmem:[%s232] sm:$0x3]
        %s234 = scalar_lea.vmem %s207, 4 [#allocation8]
        %v235 = vld [vmem:[%s234] sm:$0x3]
        %s236 = scalar_lea.vmem %s207, 6 [#allocation8]
        %v237 = vld [vmem:[%s236] sm:$0x3]
        %s238 = sld [smem:[#allocation2]]
        %v239 = vstv %s238
        %v240 = vmul.f32 %v231, %v239
        %s241 = sld [smem:[#allocation2 + $0x1]]
        %v242 = vstv %s241
        %v243 = vmul.f32 %v233, %v242
        %v244 = vadd.f32 %v240, %v243
        %s245 = sld [smem:[#allocation2 + $0x2]]
        %v246 = vstv %s245
        %v247 = vmul.f32 %v235, %v246
        %v248 = vadd.f32 %v244, %v247
        %s249 = sld [smem:[#allocation2 + $0x3]]
        %v250 = vstv %s249
        %v251 = vmul.f32 %v237, %v250
        %v252 = vadd.f32 %v248, %v251
        %s253 = sld [smem:[#allocation7]]
        %v254 = vstv %s253
        %v255 = vadd.f32 %v252, %v254
        %vm256 = vcmp.gt.f32.partialorder %v255, 0.0
        %s257 = sld [smem:[#allocation2 + $0x80]]
        %v258 = vstv %s257
        %v259 = vmul.f32 %v231, %v258
        %s260 = sld [smem:[#allocation2 + $0x81]]
        %v261 = vstv %s260
        %v262 = vmul.f32 %v233, %v261
        %v263 = vadd.f32 %v259, %v262
        %s264 = sld [smem:[#allocation2 + $0x82]]
        %v265 = vstv %s264
        %v266 = vmul.f32 %v235, %v265
        %v267 = vadd.f32 %v263, %v266
        %s268 = sld [smem:[#allocation2 + $0x83]]
        %v269 = vstv %s268
        %v270 = vmul.f32 %v237, %v269
        %v271 = vadd.f32 %v267, %v270
        %s272 = sld [smem:[#allocation7 + $0x1]]
        %v273 = vstv %s272
        %v274 = vadd.f32 %v271, %v273
        %vm275 = vcmp.gt.f32.partialorder %v274, 0.0
        %s276 = sld [smem:[#allocation2 + $0x100]]
        %v277 = vstv %s276
        %v278 = vmul.f32 %v231, %v277
        %s279 = sld [smem:[#allocation2 + $0x101]]
        %v280 = vstv %s279
        %v281 = vmul.f32 %v233, %v280
        %v282 = vadd.f32 %v278, %v281
        %s283 = sld [smem:[#allocation2 + $0x102]]
        %v284 = vstv %s283
        %v285 = vmul.f32 %v235, %v284
        %v286 = vadd.f32 %v282, %v285
        %s287 = sld [smem:[#allocation2 + $0x103]]
        %v288 = vstv %s287
        %v289 = vmul.f32 %v237, %v288
        %v290 = vadd.f32 %v286, %v289
        %s291 = sld [smem:[#allocation7 + $0x2]]
        %v292 = vstv %s291
        %v293 = vadd.f32 %v290, %v292
        %vm294 = vcmp.gt.f32.partialorder %v293, 0.0
        %vm295 = vmxor %vm256, 1
        %vm296 = vmxor %vm275, 1
        %vm297 = vmand %vm295, %vm296
        %v298 = vsel %vm297, 1, 0
        %v299 = vcvt.s32.f32 %v298
        %300 = vst [vmem:[%s230] sm:$0x3] %v299
        %vm301 = vmand %vm295, %vm275
        %v302 = vsel %vm301, 1, 0
        %v303 = vcvt.s32.f32 %v302
        %s304 = scalar_lea.vmem %s230, 2 [#allocation9]
        %305 = vst [vmem:[%s304] sm:$0x3] %v303
        %vm306 = vmxor %vm294, 1
        %vm307 = vmand %vm256, %vm306
        %v308 = vsel %vm307, 1, 0
        %v309 = vcvt.s32.f32 %v308
        %s310 = scalar_lea.vmem %s230, 4 [#allocation9]
        %311 = vst [vmem:[%s310] sm:$0x3] %v309
        %vm312 = vmand %vm256, %vm294
        %v313 = vsel %vm312, 1, 0
        %v314 = vcvt.s32.f32 %v313
        %s315 = scalar_lea.vmem %s230, 6 [#allocation9]
        %316 = vst [vmem:[%s315] sm:$0x3] %v314
        %s317 = sand.u32 %s114, 1
        %s318 = scalar_lea.sflag [#allocation4], %s317
        %s319 = sand.u32 %s114, 1
        %s320 = smul.addr %s319, 8
        %s321 = scalar_lea.vmem [#allocation9], %s320
        // Predicated region
        $region45: #{tpu_custom_call.1} parent=31 // pred_check
          %p322 = pneg %p124
        $region46: #{tpu_custom_call.1} parent=31 // pred_check_branch
          %324 = sbr.rel (%p322) target = $region48
        $region47: #{tpu_custom_call.1} parent=31 // pred_region
          %s326 = ssub.s32 128, 128
          %327 = vsyncadd %s318, %s326
          %s328 = smul.addr %s26, 4
          %s329 = sadd.s32 %s27, %s328
          %s330 = smul.addr %s329, 32
          %s331 = scalar_lea.hbm %s3, %s330
          %s332 = sshll.u32 %s321, 4
          %s333 = int_to_ptr.vmem [resolvable:$true] %s332
          %338 = dma.vmem_to_hbm [thread:$0]  %s333, 128, %s331, %s318, 32, 32, 2
        $region48: #{tpu_custom_call.1} parent=31 // pred_fallthru
          _
      $region32: #{tpu_custom_call.1} parent=5 // pred_fallthru
        _
      %p339 = scmp.le.s32.totalorder 2, %s17
      // Predicated region
      $region49: #{tpu_custom_call.1} parent=5 // pred_check
        %p340 = pneg %p339
      $region50: #{tpu_custom_call.1} parent=5 // pred_check_branch
        %342 = sbr.rel (%p340) target = $region52
      $region51: #{tpu_custom_call.1} parent=5 // pred_region
        %s343 = ssub.s32 %s17, 2
        // Predicated region
        $region53: #{tpu_custom_call.1} parent=51 // pred_check
          %p344 = pneg %p130
        $region54: #{tpu_custom_call.1} parent=51 // pred_check_branch
          %346 = sbr.rel (%p344) target = $region56
        $region55: #{tpu_custom_call.1} parent=51 // pred_region
          %s347 = sand.u32 %s115, 1
          %s348 = scalar_lea.sflag [#allocation4], %s347
          %s349 = sand.u32 %s115, 1
          %s350 = smul.addr %s349, 8
          %s351 = scalar_lea.vmem [#allocation9], %s350
          %352 = dma.done %s348, 128
        $region56: #{tpu_custom_call.1} parent=51 // pred_fallthru
          _
      $region52: #{tpu_custom_call.1} parent=5 // pred_fallthru
        _
    $region6: #{tpu_custom_call.1} parent=1 // loop_footer
      %s21 = sadd.s32 1, %s17
    $region7: #{tpu_custom_call.1} parent=1 // loop_footer_branch
      %16 = sbr.rel target = $region3
    $region8: #{tpu_custom_call.1} parent=1 // loop_exit
      _
    %353 = vsyncpa [#allocation3], 1
    %s354 = scalar_lea.sflag [#allocation3], 1
    %355 = vsyncpa %s354, 1
    %356 = vsyncpa [#allocation4], 1
    %s357 = scalar_lea.sflag [#allocation4], 1
    %358 = vsyncpa %s357, 1
    %359 = vsyncpa [#allocation5], 1
    %s360 = scalar_lea.sflag [#allocation5], 1
    %361 = vsyncpa %s360, 1
    %362 = vsyncpa [#allocation6], 1
    %s363 = scalar_lea.sflag [#allocation6], 1
    %364 = vsyncpa %s363, 1

</llo_original>
